<compile_context>
chip_gen: v6e
topology: v6e:2x2x1
jax: 0.10.0
libtpu: 0.0.40
codegen_flags: <defaults>
</compile_context>

<pallas_src>
import functools

import jax
import jax.numpy as jnp
from jax import lax
from jax.experimental import pallas as pl
from jax.experimental.pallas import tpu as pltpu


def _round_up(x, m):
    return ((x + m - 1) // m) * m


def _gcn_layer_kernel(a_ref, g_ref, *rest, n_weights, relu, compute_dtype):
    """One GCN propagation step on a (row_block i, k_block k) grid.

      acc[i] = sum_k A[i, k] @ G[k]                 (f32 accumulator)
      finalize (last k):
        h = acc[i]
        if n_weights == 2: h = h @ W_pre.T          # this layer's Linear
        if relu:           h = relu(h)
        if n_weights >= 1: h = h @ W_post.T         # next layer's Linear, fused
        out[i] = h
    """
    *w_refs, o_ref, acc_ref = rest
    k = pl.program_id(1)

    @pl.when(k == 0)
    def _init():
        acc_ref[...] = jnp.zeros_like(acc_ref)

    acc_ref[...] += jnp.dot(a_ref[...], g_ref[...],
                            preferred_element_type=jnp.float32)

    @pl.when(k == pl.num_programs(1) - 1)
    def _finalize():
        # Contract the in_features axis of PyTorch-layout (out, in) weights:
        # h @ W.T  ==  dot_general(h, W, contracting dims (1, 1)).
        dn = (((1,), (1,)), ((), ()))
        h = acc_ref[...]
        w_idx = 0
        if n_weights == 2:
            h = lax.dot_general(h.astype(compute_dtype), w_refs[w_idx][...], dn,
                                preferred_element_type=jnp.float32)
            w_idx += 1
        if relu:
            h = jnp.maximum(h, 0.0)
        if n_weights >= 1:
            h = lax.dot_general(h.astype(compute_dtype), w_refs[w_idx][...], dn,
                                preferred_element_type=jnp.float32)
        o_ref[...] = h.astype(o_ref.dtype)


def _propagate(a_pad, g_pad, weights, *, relu, out_f_pad, out_dtype,
               bm, bk, compute_dtype):
    """out = [relu](A @ G) [@ W_pre.T] [@ W_post.T], tiled over A."""
    n_pad = a_pad.shape[0]
    f_in_pad = g_pad.shape[1]
    grid = (n_pad // bm, n_pad // bk)

    in_specs = [
        pl.BlockSpec((bm, bk), lambda i, k: (i, k)),        # A tile
        pl.BlockSpec((bk, f_in_pad), lambda i, k: (k, 0)),  # feature row block
    ]
    for w in weights:                                       # small, VMEM-resident
        in_specs.append(pl.BlockSpec(w.shape, lambda i, k: (0, 0)))

    kernel = functools.partial(_gcn_layer_kernel, n_weights=len(weights),
                               relu=relu, compute_dtype=compute_dtype)

    return pl.pallas_call(
        kernel,
        out_shape=jax.ShapeDtypeStruct((n_pad, out_f_pad), out_dtype),
        grid=grid,
        in_specs=in_specs,
        out_specs=pl.BlockSpec((bm, out_f_pad), lambda i, k: (i, 0)),
        scratch_shapes=[pltpu.VMEM((bm, f_in_pad), jnp.float32)],
        compiler_params=pltpu.CompilerParams(
            dimension_semantics=("parallel", "arbitrary"),
            vmem_limit_bytes=48 * 1024 * 1024),
    )(a_pad, g_pad, *weights)


def gcn_forward(a_hat, x, w1, w2, w3, *, compute_dtype=jnp.float32,
                block_n=256):
    """GCN forward matching the PyTorch module, exactly reassociated as
         G2  = relu((A@X) @ W1.T) @ W2.T
         G3  = relu( A@G2       ) @ W3.T
         out =       A@G3
    """
    n, dim_in = x.shape
    dim_hid = w2.shape[0]
    dim_out = w3.shape[0]
    cdt = jnp.dtype(compute_dtype)

    # Sublane granule: bf16 packs 16 rows per vreg, f32 packs 8.
    sub = 16 if cdt.itemsize < 4 else 8
    if n <= block_n:
        n_pad = _round_up(n, sub)
        bm = bk = n_pad
    else:
        n_pad = _round_up(n, block_n)
        bm = bk = block_n

    f_in_pad = _round_up(dim_in, 128)
    f_hid_pad = _round_up(dim_hid, 128)
    f_out_pad = _round_up(dim_out, 128)

    def pad2(m, rows, cols, dtype):
        buf = jnp.zeros((rows, cols), dtype)
        return buf.at[:m.shape[0], :m.shape[1]].set(m.astype(dtype))

    a_p = pad2(a_hat, n_pad, n_pad, cdt)
    x_p = pad2(x, n_pad, f_in_pad, cdt)
    w1_p = pad2(w1, f_in_pad, f_in_pad, cdt)
    w2_p = pad2(w2, f_hid_pad, f_in_pad, cdt)
    w3_p = pad2(w3, f_out_pad, f_hid_pad, cdt)

    common = dict(bm=bm, bk=bk, compute_dtype=cdt)
    # Layer 1 (+ layer-2 weight fused weight-first): G2 = relu((A@X)@W1.T)@W2.T
    g2 = _propagate(a_p, x_p, (w1_p, w2_p), relu=True,
                    out_f_pad=f_hid_pad, out_dtype=cdt, **common)
    # Layer 2 (+ layer-3 weight fused):              G3 = relu(A@G2) @ W3.T
    g3 = _propagate(a_p, g2, (w3_p,), relu=True,
                    out_f_pad=f_out_pad, out_dtype=cdt, **common)
    # Layer 3 propagation only:                      out = A@G3
    out = _propagate(a_p, g3, (), relu=False,
                     out_f_pad=f_out_pad, out_dtype=jnp.float32, **common)
    return out[:n, :dim_out]


def normalize_adjacency(a):
    """Replicates the PyTorch __init__: A <- A + I; D = diag(rowsum^-0.5); D A D."""
    n = a.shape[0]
    a = a + jnp.eye(n, dtype=a.dtype)
    d = jnp.power(a.sum(axis=1), -0.5)
    return (d[:, None] * a) * d[None, :]


def reference_forward(a_hat, x, w1, w2, w3):
    hp = jax.lax.Precision.HIGHEST
    mm = lambda p, q: jnp.matmul(p, q, precision=hp)
    h = jax.nn.relu(mm(mm(a_hat, x), w1.T))
    h = jax.nn.relu(mm(mm(a_hat, h), w2.T))
    return mm(mm(a_hat, h), w3.T)


if __name__ == "__main__":
    key = jax.random.PRNGKey(0)

    def make_case(subkey, n, dim_in, dim_out):
        k_a, k_x, k_w1, k_w2, k_w3 = jax.random.split(subkey, 5)
        # Deterministic synthetic adjacency: symmetric 0/1, zero diagonal.
        raw = (jax.random.uniform(k_a, (n, n)) > 0.5).astype(jnp.float32)
        adj = jnp.triu(raw, k=1)
        adj = adj + adj.T
        a_hat = normalize_adjacency(adj)
        x = jax.random.normal(k_x, (n, dim_in), dtype=jnp.float32)
        # nn.Linear weight shapes: (out_features, in_features), bias=False.
        w1 = jax.random.normal(k_w1, (dim_in, dim_in), dtype=jnp.float32) * 0.1
        w2 = jax.random.normal(k_w2, (dim_in // 2, dim_in), dtype=jnp.float32) * 0.1
        w3 = jax.random.normal(k_w3, (dim_out, dim_in // 2), dtype=jnp.float32) * 0.1
        return a_hat, x, w1, w2, w3

    # Case 1: tiny module shapes (single-block grid), f32 MXU path.
    args_s = make_case(jax.random.fold_in(key, 0), 8, 32, 16)
    ref_s = reference_forward(*args_s)
    out_s = jax.block_until_ready(gcn_forward(*args_s))
    assert out_s.shape == (8, 16)
    assert jnp.allclose(out_s, ref_s, atol=1e-4, rtol=1e-4)

    # Case 1b: same shapes through the bf16 MXU path (f32 accumulation).
    out_bf16 = jax.block_until_ready(
        gcn_forward(*args_s, compute_dtype=jnp.bfloat16))
    assert out_bf16.shape == (8, 16)
    assert jnp.allclose(out_bf16, ref_s, atol=5e-2, rtol=5e-2)

    # Case 2: larger graph exercising the (row-parallel x K-arbitrary) tiling
    # of A (N=320 pads to 512 -> 2x2 grid of 256x256 A tiles) and odd feature
    # dims (64 / 32 / 10) padded to 128 lanes.
    args_l = make_case(jax.random.fold_in(key, 1), 320, 64, 10)
    ref_l = reference_forward(*args_l)
    out_l = jax.block_until_ready(gcn_forward(*args_l))
    assert out_l.shape == (320, 10)
    assert jnp.allclose(out_l, ref_l, atol=1e-3, rtol=1e-3)

    print("KERNEL_OK")
</pallas_src>

<mosaic_0001>
module attributes {stable_mosaic.version = 11 : i64} {
  func.func @_gcn_layer_kernel(%arg0: i32, %arg1: i32, %arg2: memref<8x8xf32, #tpu.memory_space<vmem>>, %arg3: memref<8x128xf32, #tpu.memory_space<vmem>>, %arg4: memref<128x128xf32, #tpu.memory_space<vmem>>, %arg5: memref<128x128xf32, #tpu.memory_space<vmem>>, %arg6: memref<8x128xf32, #tpu.memory_space<vmem>>, %arg7: memref<8x128xf32, #tpu.memory_space<vmem>>) attributes {dimension_semantics = [#tpu.dimension_semantics<parallel>, #tpu.dimension_semantics<arbitrary>], iteration_bounds = array<i64: 1, 1>, scalar_prefetch = 0 : i64, scratch_operands = 1 : i64, tpu.core_type = #tpu.core_type<tc>, window_params = [{transform_indices = @transform_0, window_bounds = array<i64: 8, 8>}, {transform_indices = @transform_1, window_bounds = array<i64: 8, 128>}, {pipeline_mode = #tpu.pipeline_mode<synchronous>, transform_indices = @transform_2, window_bounds = array<i64: 128, 128>}, {pipeline_mode = #tpu.pipeline_mode<synchronous>, transform_indices = @transform_3, window_bounds = array<i64: 128, 128>}, {transform_indices = @transform_4, window_bounds = array<i64: 8, 128>}]} {
    %c0_i32 = arith.constant 0 : i32
    %0 = arith.cmpi eq, %arg1, %c0_i32 : i32
    %1 = arith.extui %0 : i1 to i32
    %c0_i32_0 = arith.constant 0 : i32
    %2 = arith.cmpi ne, %1, %c0_i32_0 : i32
    scf.if %2 {
      %cst_10 = arith.constant 0.000000e+00 : f32
      %12 = vector.broadcast %cst_10 : f32 to vector<8x128xf32>
      %c0_11 = arith.constant 0 : index
      %c0_12 = arith.constant 0 : index
      %13 = vector.load %arg7[%c0_11, %c0_12] : memref<8x128xf32, #tpu.memory_space<vmem>>, vector<8x128xf32>
      tpu.vector_store %arg7[%c0_11, %c0_12], %12 {strides = array<i32>} : memref<8x128xf32, #tpu.memory_space<vmem>>, vector<8x128xf32>,
    } else {
    }
    %c0 = arith.constant 0 : index
    %c0_1 = arith.constant 0 : index
    %3 = vector.load %arg7[%c0, %c0_1] : memref<8x128xf32, #tpu.memory_space<vmem>>, vector<8x128xf32>
    %c0_2 = arith.constant 0 : index
    %c0_3 = arith.constant 0 : index
    %4 = vector.load %arg2[%c0_2, %c0_3] : memref<8x8xf32, #tpu.memory_space<vmem>>, vector<8x8xf32>
    %c0_4 = arith.constant 0 : index
    %c0_5 = arith.constant 0 : index
    %5 = vector.load %arg3[%c0_4, %c0_5] : memref<8x128xf32, #tpu.memory_space<vmem>>, vector<8x128xf32>
    %cst = arith.constant dense<0.000000e+00> : vector<8x128xf32>
    %6 = tpu.matmul %4, %5, %cst {dimension_numbers = #tpu.dot_dimension_numbers<[1], [0], [0], [1], [0, 0, 1, 1], [], []>} : vector<8x8xf32>, vector<8x128xf32>, vector<8x128xf32> -> vector<8x128xf32>
    %7 = arith.addf %3, %6 : vector<8x128xf32>
    %c0_6 = arith.constant 0 : index
    %c0_7 = arith.constant 0 : index
    %8 = vector.load %arg7[%c0_6, %c0_7] : memref<8x128xf32, #tpu.memory_space<vmem>>, vector<8x128xf32>
    tpu.vector_store %arg7[%c0_6, %c0_7], %7 {strides = array<i32>} : memref<8x128xf32, #tpu.memory_space<vmem>>, vector<8x128xf32>,
    %c0_i32_8 = arith.constant 0 : i32
    %9 = arith.cmpi eq, %arg1, %c0_i32_8 : i32
    %10 = arith.extui %9 : i1 to i32
    %c0_i32_9 = arith.constant 0 : i32
    %11 = arith.cmpi ne, %10, %c0_i32_9 : i32
    scf.if %11 {
      %c0_10 = arith.constant 0 : index
      %c0_11 = arith.constant 0 : index
      %12 = vector.load %arg7[%c0_10, %c0_11] : memref<8x128xf32, #tpu.memory_space<vmem>>, vector<8x128xf32>
      %c0_12 = arith.constant 0 : index
      %c0_13 = arith.constant 0 : index
      %13 = vector.load %arg4[%c0_12, %c0_13] : memref<128x128xf32, #tpu.memory_space<vmem>>, vector<128x128xf32>
      %cst_14 = arith.constant dense<0.000000e+00> : vector<8x128xf32>
      %14 = tpu.matmul %12, %13, %cst_14 {dimension_numbers = #tpu.dot_dimension_numbers<[1], [1], [0], [0], [0, 0, 1, 0], [], []>} : vector<8x128xf32>, vector<128x128xf32>, vector<8x128xf32> -> vector<8x128xf32>
      %cst_15 = arith.constant 0.000000e+00 : f32
      %15 = vector.broadcast %cst_15 : f32 to vector<8x128xf32>
      %16 = arith.maximumf %14, %15 : vector<8x128xf32>
      %c0_16 = arith.constant 0 : index
      %c0_17 = arith.constant 0 : index
      %17 = vector.load %arg5[%c0_16, %c0_17] : memref<128x128xf32, #tpu.memory_space<vmem>>, vector<128x128xf32>
      %cst_18 = arith.constant dense<0.000000e+00> : vector<8x128xf32>
      %18 = tpu.matmul %16, %17, %cst_18 {dimension_numbers = #tpu.dot_dimension_numbers<[1], [1], [0], [0], [0, 0, 1, 0], [], []>} : vector<8x128xf32>, vector<128x128xf32>, vector<8x128xf32> -> vector<8x128xf32>
      %c0_19 = arith.constant 0 : index
      %c0_20 = arith.constant 0 : index
      %19 = vector.load %arg6[%c0_19, %c0_20] : memref<8x128xf32, #tpu.memory_space<vmem>>, vector<8x128xf32>
      tpu.vector_store %arg6[%c0_19, %c0_20], %18 {strides = array<i32>} : memref<8x128xf32, #tpu.memory_space<vmem>>, vector<8x128xf32>,
    } else {
    }
    return
  }
  func.func @transform_0(%arg0: i32, %arg1: i32) -> (i32, i32) {
    %c0_i32 = arith.constant 0 : i32
    return %arg0, %arg1 : i32, i32
  }
  func.func @transform_1(%arg0: i32, %arg1: i32) -> (i32, i32) {
    %c0_i32 = arith.constant 0 : i32
    %c0_i32_0 = arith.constant 0 : i32
    return %arg1, %c0_i32 : i32, i32
  }
  func.func @transform_2(%arg0: i32, %arg1: i32) -> (i32, i32) {
    %c0_i32 = arith.constant 0 : i32
    %c0_i32_0 = arith.constant 0 : i32
    %c0_i32_1 = arith.constant 0 : i32
    return %c0_i32, %c0_i32_0 : i32, i32
  }
  func.func @transform_3(%arg0: i32, %arg1: i32) -> (i32, i32) {
    %c0_i32 = arith.constant 0 : i32
    %c0_i32_0 = arith.constant 0 : i32
    %c0_i32_1 = arith.constant 0 : i32
    return %c0_i32, %c0_i32_0 : i32, i32
  }
  func.func @transform_4(%arg0: i32, %arg1: i32) -> (i32, i32) {
    %c0_i32 = arith.constant 0 : i32
    %c0_i32_0 = arith.constant 0 : i32
    return %arg0, %c0_i32 : i32, i32
  }
}

</mosaic_0001>

<llo_original>
// kernel: tpu_custom_call.1
$region0: #{tpu_custom_call.1}
  #allocation0 [shape = 'u32[]', space=smem, size = 0x4, offset = 0x4, fixed_abs, tag = 'smem constant byte address 0x4 - core index']
  #allocation1 [shape = 'u32[144,128]{1,0:T(1,128)}', space=vmem, size = 0x12000, scoped, tag = 'internal scratch']
  #allocation2 [shape = 'f32[8,128]{1,0:T(8,128)}', space=vmem, size = 0x1000, scoped, tag = 'scratch operand']
  %s0 = inlined_call_operand.hbm [shape: f32[8,8], index: 0, kind: input, shape index: {}]
  %s1 = inlined_call_operand.hbm [shape: f32[8,128], index: 1, kind: input, shape index: {}]
  %s2 = inlined_call_operand.hbm [shape: f32[128,128], index: 2, kind: input, shape index: {}]
  %s3 = inlined_call_operand.hbm [shape: f32[128,128], index: 3, kind: input, shape index: {}]
  %s4 = inlined_call_operand.hbm [shape: f32[8,128], index: 4, kind: output, shape index: {}]
  %s5 = sld [smem:[#allocation0]]
  $region50: #{tpu_custom_call.1} parent=0
    _
  %s7 = ssub.s32 1, %s5
  %s8 = scalar_select 0, %s7, %s5
  $region1: #{tpu_custom_call.1} parent=0
    #allocation3 [shape = 'u8[4096]{0}', space=vmem, size = 0x1000, scoped, tag = 'input window, operand 0, single buffered']
    #allocation4 [shape = 's32[1]{0}', space=sflag, size = 0x4, scoped, tag = 'scoped memory for tpu_custom_call.1']
    #allocation5 [shape = 's32[1]{0}', space=sflag, size = 0x4, scoped, tag = 'scoped memory for tpu_custom_call.1']
    #allocation6 [shape = 'u8[4096]{0}', space=vmem, size = 0x1000, scoped, tag = 'input window, operand 1, single buffered']
    #allocation7 [shape = 's32[1]{0}', space=sflag, size = 0x4, scoped, tag = 'scoped memory for tpu_custom_call.1']
    #allocation8 [shape = 'u8[65536]{0}', space=vmem, size = 0x10000, scoped, tag = 'input window, operand 2, single buffered']
    #allocation9 [shape = 'u8[65536]{0}', space=vmem, size = 0x10000, scoped, tag = 'input window, operand 3, single buffered']
    #allocation10 [shape = 's32[1]{0}', space=sflag, size = 0x4, scoped, tag = 'scoped memory for tpu_custom_call.1']
    #allocation11 [shape = 'u8[4096]{0}', space=vmem, size = 0x1000, scoped, tag = 'output window, operand 0, single buffered']
    %9 = vsyncpa [#allocation4], 0
    %10 = vsyncpa [#allocation7], 0
    %11 = vsyncpa [#allocation10], 0
    %12 = vsyncpa [#allocation5], 0
    // Predicated region
    $region2: #{tpu_custom_call.1} parent=1 // pred_check
      _
    $region3: #{tpu_custom_call.1} parent=1 // pred_check_branch
      %14 = sbr.rel (0) target = $region5
    $region4: #{tpu_custom_call.1} parent=1 // pred_region
      %s16 = ssub.s32 128, 128
      %17 = vsyncadd [#allocation4], %s16
      %s19 = sshll.u32 [#allocation3], 4
      %s20 = int_to_ptr.vmem [resolvable:$true] %s19
      %22 = dma.hbm_to_vmem [thread:$0]  %s0, 128, %s20, [#allocation4]
    $region5: #{tpu_custom_call.1} parent=1 // pred_fallthru
      _
    // Predicated region
    $region6: #{tpu_custom_call.1} parent=1 // pred_check
      _
    $region7: #{tpu_custom_call.1} parent=1 // pred_check_branch
      %24 = sbr.rel (0) target = $region9
    $region8: #{tpu_custom_call.1} parent=1 // pred_region
      %s26 = ssub.s32 128, 128
      %27 = vsyncadd [#allocation7], %s26
      %s29 = sshll.u32 [#allocation6], 4
      %s30 = int_to_ptr.vmem [resolvable:$true] %s29
      %32 = dma.hbm_to_vmem [thread:$0]  %s1, 128, %s30, [#allocation7]
    $region9: #{tpu_custom_call.1} parent=1 // pred_fallthru
      _
    // Predicated region
    $region10: #{tpu_custom_call.1} parent=1 // pred_check
      _
    $region11: #{tpu_custom_call.1} parent=1 // pred_check_branch
      %34 = sbr.rel (0) target = $region13
    $region12: #{tpu_custom_call.1} parent=1 // pred_region
      %s36 = ssub.s32 2048, 2048
      %37 = vsyncadd [#allocation7], %s36
      %s38 = sshll.u32 [#allocation8], 4
      %s39 = int_to_ptr.vmem [resolvable:$true] %s38
      %44 = dma.hbm_to_vmem [thread:$0]  %s2, 2048, %s39, [#allocation7], 128, 128, 8
    $region13: #{tpu_custom_call.1} parent=1 // pred_fallthru
      _
    // Predicated region
    $region14: #{tpu_custom_call.1} parent=1 // pred_check
      _
    $region15: #{tpu_custom_call.1} parent=1 // pred_check_branch
      %46 = sbr.rel (0) target = $region17
    $region16: #{tpu_custom_call.1} parent=1 // pred_region
      %s48 = ssub.s32 2048, 2048
      %49 = vsyncadd [#allocation10], %s48
      %s50 = sshll.u32 [#allocation9], 4
      %s51 = int_to_ptr.vmem [resolvable:$true] %s50
      %56 = dma.hbm_to_vmem [thread:$0]  %s3, 2048, %s51, [#allocation10], 128, 128, 8
    $region17: #{tpu_custom_call.1} parent=1 // pred_fallthru
      _
    // Predicated region
    $region18: #{tpu_custom_call.1} parent=1 // pred_check
      _
    $region19: #{tpu_custom_call.1} parent=1 // pred_check_branch
      %58 = sbr.rel (0) target = $region21
    $region20: #{tpu_custom_call.1} parent=1 // pred_region
      %59 = dma.done [#allocation4], 128
    $region21: #{tpu_custom_call.1} parent=1 // pred_fallthru
      _
    // Predicated region
    $region22: #{tpu_custom_call.1} parent=1 // pred_check
      _
    $region23: #{tpu_custom_call.1} parent=1 // pred_check_branch
      %61 = sbr.rel (0) target = $region25
    $region24: #{tpu_custom_call.1} parent=1 // pred_region
      %62 = dma.done [#allocation7], 128
    $region25: #{tpu_custom_call.1} parent=1 // pred_fallthru
      _
    // Predicated region
    $region26: #{tpu_custom_call.1} parent=1 // pred_check
      _
    $region27: #{tpu_custom_call.1} parent=1 // pred_check_branch
      %64 = sbr.rel (0) target = $region29
    $region28: #{tpu_custom_call.1} parent=1 // pred_region
      %65 = dma.done [#allocation7], 2048
    $region29: #{tpu_custom_call.1} parent=1 // pred_fallthru
      _
    // Predicated region
    $region30: #{tpu_custom_call.1} parent=1 // pred_check
      _
    $region31: #{tpu_custom_call.1} parent=1 // pred_check_branch
      %67 = sbr.rel (0) target = $region33
    $region32: #{tpu_custom_call.1} parent=1 // pred_region
      %68 = dma.done [#allocation10], 2048
    $region33: #{tpu_custom_call.1} parent=1 // pred_fallthru
      _
    %p69 = scmp.eq.s32.totalorder 0, 0
    // Predicated region
    $region34: #{tpu_custom_call.1} parent=1 // pred_check
      %p70 = pneg %p69
    $region35: #{tpu_custom_call.1} parent=1 // pred_check_branch
      %72 = sbr.rel (%p70) target = $region37
    $region36: #{tpu_custom_call.1} parent=1 // pred_region
      %73 = vst [vmem:[#allocation2] sm:$0xff] 0.0
    $region37: #{tpu_custom_call.1} parent=1 // pred_fallthru
      _
    %v74 = vld [vmem:[#allocation2] sm:$0xff]
    %v75 = vld [vmem:[#allocation3] sm:$0xff]
    %v76 = vld [vmem:[#allocation6] sm:$0xff]
    %vm77 = vcmask 64512
    %v79 = vsel %vm77, %v75, 0
    %81 = vmatprep.subr.mxu0 0.0
    %82 = vmatpush1.msra.mxu0 0.0
    %83 = vmatprep.subr.mxu0 0.0
    %84 = vmatpush1.msra.mxu0 0.0
    %85 = vmatprep.subr.mxu0 0.0
    %86 = vmatpush1.msra.mxu0 0.0
    %87 = vmatprep.subr.mxu0 0.0
    %88 = vmatpush1.msra.mxu0 0.0
    %89 = vmatprep.subr.mxu0 0.0
    %90 = vmatpush1.msra.mxu0 0.0
    %91 = vmatprep.subr.mxu0 0.0
    %92 = vmatpush1.msra.mxu0 0.0
    %93 = vmatprep.subr.mxu0 0.0
    %94 = vmatpush1.msra.mxu0 0.0
    %95 = vmatprep.subr.mxu0 0.0
    %96 = vmatpush1.msra.mxu0 0.0
    %97 = vmatprep.subr.mxu0 0.0
    %98 = vmatpush1.msra.mxu0 0.0
    %99 = vmatprep.subr.mxu0 0.0
    %100 = vmatpush1.msra.mxu0 0.0
    %101 = vmatprep.subr.mxu0 0.0
    %102 = vmatpush1.msra.mxu0 0.0
    %103 = vmatprep.subr.mxu0 0.0
    %104 = vmatpush1.msra.mxu0 0.0
    %105 = vmatprep.subr.mxu0 0.0
    %106 = vmatpush1.msra.mxu0 0.0
    %107 = vmatprep.subr.mxu0 0.0
    %108 = vmatpush1.msra.mxu0 0.0
    %109 = vmatprep.subr.mxu0 0.0
    %110 = vmatpush1.msra.mxu0 0.0
    %111 = vmatprep.subr.mxu0 0.0
    %112 = vmatpush1.msra.mxu0 %v76
    %113 = vmatprep.subr.mxu0 0.0
    %114 = vmatpush2.msra.mxu0 0.0
    %115 = vmatprep.subr.mxu0 0.0
    %116 = vmatpush2.msra.mxu0 0.0
    %117 = vmatprep.subr.mxu0 0.0
    %118 = vmatpush2.msra.mxu0 0.0
    %119 = vmatprep.subr.mxu0 0.0
    %120 = vmatpush2.msra.mxu0 0.0
    %121 = vmatprep.subr.mxu0 0.0
    %122 = vmatpush2.msra.mxu0 0.0
    %123 = vmatprep.subr.mxu0 0.0
    %124 = vmatpush2.msra.mxu0 0.0
    %125 = vmatprep.subr.mxu0 0.0
    %126 = vmatpush2.msra.mxu0 0.0
    %127 = vmatprep.subr.mxu0 0.0
    %128 = vmatpush2.msra.mxu0 0.0
    %129 = vmatprep.subr.mxu0 0.0
    %130 = vmatpush2.msra.mxu0 0.0
    %131 = vmatprep.subr.mxu0 0.0
    %132 = vmatpush2.msra.mxu0 0.0
    %133 = vmatprep.subr.mxu0 0.0
    %134 = vmatpush2.msra.mxu0 0.0
    %135 = vmatprep.subr.mxu0 0.0
    %136 = vmatpush2.msra.mxu0 0.0
    %137 = vmatprep.subr.mxu0 0.0
    %138 = vmatpush2.msra.mxu0 0.0
    %139 = vmatprep.subr.mxu0 0.0
    %140 = vmatpush2.msra.mxu0 0.0
    %141 = vmatprep.subr.mxu0 0.0
    %142 = vmatpush2.msra.mxu0 0.0
    %143 = vmatprep.subr.mxu0 0.0
    %144 = vmatpush2.msra.mxu0 0.0
    %145 = vmatprep.mubr.f32.mxu0 0.0
    %146 = vmatmul.mubr.f32.gmra.mxu0 %v79
    %v147 = vpop.f32.mrf.mxu0
    %v148 = vadd.f32 0.0, %v147
    %v149 = vpop.f32.mrf.mxu0
    %150 = vdwg.mxu0
    %v151 = vadd.f32 %v74, %v148
    %152 = vst [vmem:[#allocation2] sm:$0xff] %v151
    // Predicated region
    $region38: #{tpu_custom_call.1} parent=1 // pred_check
      %p153 = pneg %p69
    $region39: #{tpu_custom_call.1} parent=1 // pred_check_branch
      %155 = sbr.rel (%p153) target = $region41
    $region40: #{tpu_custom_call.1} parent=1 // pred_region
      %v156 = vld [vmem:[#allocation2] sm:$0xff]
      %v157 = vld [vmem:[#allocation8] sm:$0xff]
      %v158 = vld [vmem:[#allocation8 + $0x8] sm:$0xff]
      %v159 = vld [vmem:[#allocation8 + $0x10] sm:$0xff]
      %v160 = vld [vmem:[#allocation8 + $0x18] sm:$0xff]
      %v161 = vld [vmem:[#allocation8 + $0x20] sm:$0xff]
      %v162 = vld [vmem:[#allocation8 + $0x28] sm:$0xff]
      %v163 = vld [vmem:[#allocation8 + $0x30] sm:$0xff]
      %v164 = vld [vmem:[#allocation8 + $0x38] sm:$0xff]
      %v165 = vld [vmem:[#allocation8 + $0x40] sm:$0xff]
      %v166 = vld [vmem:[#allocation8 + $0x48] sm:$0xff]
      %v167 = vld [vmem:[#allocation8 + $0x50] sm:$0xff]
      %v168 = vld [vmem:[#allocation8 + $0x58] sm:$0xff]
      %v169 = vld [vmem:[#allocation8 + $0x60] sm:$0xff]
      %v170 = vld [vmem:[#allocation8 + $0x68] sm:$0xff]
      %v171 = vld [vmem:[#allocation8 + $0x70] sm:$0xff]
      %v172 = vld [vmem:[#allocation8 + $0x78] sm:$0xff]
      %173 = vmatprep.subr.mxu0 0.0
      %174 = vmatpush1.xpose.msra.mxu0 %v172
      %175 = vmatprep.subr.mxu0 0.0
      %176 = vmatpush1.xpose.msra.mxu0 %v171
      %177 = vmatprep.subr.mxu0 0.0
      %178 = vmatpush1.xpose.msra.mxu0 %v170
      %179 = vmatprep.subr.mxu0 0.0
      %180 = vmatpush1.xpose.msra.mxu0 %v169
      %181 = vmatprep.subr.mxu0 0.0
      %182 = vmatpush1.xpose.msra.mxu0 %v168
      %183 = vmatprep.subr.mxu0 0.0
      %184 = vmatpush1.xpose.msra.mxu0 %v167
      %185 = vmatprep.subr.mxu0 0.0
      %186 = vmatpush1.xpose.msra.mxu0 %v166
      %187 = vmatprep.subr.mxu0 0.0
      %188 = vmatpush1.xpose.msra.mxu0 %v165
      %189 = vmatprep.subr.mxu0 0.0
      %190 = vmatpush1.xpose.msra.mxu0 %v164
      %191 = vmatprep.subr.mxu0 0.0
      %192 = vmatpush1.xpose.msra.mxu0 %v163
      %193 = vmatprep.subr.mxu0 0.0
      %194 = vmatpush1.xpose.msra.mxu0 %v162
      %195 = vmatprep.subr.mxu0 0.0
      %196 = vmatpush1.xpose.msra.mxu0 %v161
      %197 = vmatprep.subr.mxu0 0.0
      %198 = vmatpush1.xpose.msra.mxu0 %v160
      %199 = vmatprep.subr.mxu0 0.0
      %200 = vmatpush1.xpose.msra.mxu0 %v159
      %201 = vmatprep.subr.mxu0 0.0
      %202 = vmatpush1.xpose.msra.mxu0 %v158
      %203 = vmatprep.subr.mxu0 0.0
      %204 = vmatpush1.xpose.msra.mxu0 %v157
      %205 = vmatprep.subr.mxu0 0.0
      %206 = vmatpush2.xpose.msra.mxu0 0.0
      %207 = vmatprep.subr.mxu0 0.0
      %208 = vmatpush2.xpose.msra.mxu0 0.0
      %209 = vmatprep.subr.mxu0 0.0
      %210 = vmatpush2.xpose.msra.mxu0 0.0
      %211 = vmatprep.subr.mxu0 0.0
      %212 = vmatpush2.xpose.msra.mxu0 0.0
      %213 = vmatprep.subr.mxu0 0.0
      %214 = vmatpush2.xpose.msra.mxu0 0.0
      %215 = vmatprep.subr.mxu0 0.0
      %216 = vmatpush2.xpose.msra.mxu0 0.0
      %217 = vmatprep.subr.mxu0 0.0
      %218 = vmatpush2.xpose.msra.mxu0 0.0
      %219 = vmatprep.subr.mxu0 0.0
      %220 = vmatpush2.xpose.msra.mxu0 0.0
      %221 = vmatprep.subr.mxu0 0.0
      %222 = vmatpush2.xpose.msra.mxu0 0.0
      %223 = vmatprep.subr.mxu0 0.0
      %224 = vmatpush2.xpose.msra.mxu0 0.0
      %225 = vmatprep.subr.mxu0 0.0
      %226 = vmatpush2.xpose.msra.mxu0 0.0
      %227 = vmatprep.subr.mxu0 0.0
      %228 = vmatpush2.xpose.msra.mxu0 0.0
      %229 = vmatprep.subr.mxu0 0.0
      %230 = vmatpush2.xpose.msra.mxu0 0.0
      %231 = vmatprep.subr.mxu0 0.0
      %232 = vmatpush2.xpose.msra.mxu0 0.0
      %233 = vmatprep.subr.mxu0 0.0
      %234 = vmatpush2.xpose.msra.mxu0 0.0
      %235 = vmatprep.subr.mxu0 0.0
      %236 = vmatpush2.xpose.msra.mxu0 0.0
      %237 = vmatprep.mubr.f32.mxu0 0.0
      %238 = vmatmul.mubr.f32.gmra.mxu0 %v156
      %v239 = vpop.f32.mrf.mxu0
      %v240 = vadd.f32 0.0, %v239
      %v241 = vpop.f32.mrf.mxu0
      %242 = vdwg.mxu0
      %v243 = vmax.f32 %v240, 0.0
      %v244 = vld [vmem:[#allocation9] sm:$0xff]
      %v245 = vld [vmem:[#allocation9 + $0x8] sm:$0xff]
      %v246 = vld [vmem:[#allocation9 + $0x10] sm:$0xff]
      %v247 = vld [vmem:[#allocation9 + $0x18] sm:$0xff]
      %v248 = vld [vmem:[#allocation9 + $0x20] sm:$0xff]
      %v249 = vld [vmem:[#allocation9 + $0x28] sm:$0xff]
      %v250 = vld [vmem:[#allocation9 + $0x30] sm:$0xff]
      %v251 = vld [vmem:[#allocation9 + $0x38] sm:$0xff]
      %v252 = vld [vmem:[#allocation9 + $0x40] sm:$0xff]
      %v253 = vld [vmem:[#allocation9 + $0x48] sm:$0xff]
      %v254 = vld [vmem:[#allocation9 + $0x50] sm:$0xff]
      %v255 = vld [vmem:[#allocation9 + $0x58] sm:$0xff]
      %v256 = vld [vmem:[#allocation9 + $0x60] sm:$0xff]
      %v257 = vld [vmem:[#allocation9 + $0x68] sm:$0xff]
      %v258 = vld [vmem:[#allocation9 + $0x70] sm:$0xff]
      %v259 = vld [vmem:[#allocation9 + $0x78] sm:$0xff]
      %260 = vmatprep.subr.mxu0 0.0
      %261 = vmatpush1.xpose.msra.mxu0 %v259
      %262 = vmatprep.subr.mxu0 0.0
      %263 = vmatpush1.xpose.msra.mxu0 %v258
      %264 = vmatprep.subr.mxu0 0.0
      %265 = vmatpush1.xpose.msra.mxu0 %v257
      %266 = vmatprep.subr.mxu0 0.0
      %267 = vmatpush1.xpose.msra.mxu0 %v256
      %268 = vmatprep.subr.mxu0 0.0
      %269 = vmatpush1.xpose.msra.mxu0 %v255
      %270 = vmatprep.subr.mxu0 0.0
      %271 = vmatpush1.xpose.msra.mxu0 %v254
      %272 = vmatprep.subr.mxu0 0.0
      %273 = vmatpush1.xpose.msra.mxu0 %v253
      %274 = vmatprep.subr.mxu0 0.0
      %275 = vmatpush1.xpose.msra.mxu0 %v252
      %276 = vmatprep.subr.mxu0 0.0
      %277 = vmatpush1.xpose.msra.mxu0 %v251
      %278 = vmatprep.subr.mxu0 0.0
      %279 = vmatpush1.xpose.msra.mxu0 %v250
      %280 = vmatprep.subr.mxu0 0.0
      %281 = vmatpush1.xpose.msra.mxu0 %v249
      %282 = vmatprep.subr.mxu0 0.0
      %283 = vmatpush1.xpose.msra.mxu0 %v248
      %284 = vmatprep.subr.mxu0 0.0
      %285 = vmatpush1.xpose.msra.mxu0 %v247
      %286 = vmatprep.subr.mxu0 0.0
      %287 = vmatpush1.xpose.msra.mxu0 %v246
      %288 = vmatprep.subr.mxu0 0.0
      %289 = vmatpush1.xpose.msra.mxu0 %v245
      %290 = vmatprep.subr.mxu0 0.0
      %291 = vmatpush1.xpose.msra.mxu0 %v244
      %292 = vmatprep.subr.mxu0 0.0
      %293 = vmatpush2.xpose.msra.mxu0 0.0
      %294 = vmatprep.subr.mxu0 0.0
      %295 = vmatpush2.xpose.msra.mxu0 0.0
      %296 = vmatprep.subr.mxu0 0.0
      %297 = vmatpush2.xpose.msra.mxu0 0.0
      %298 = vmatprep.subr.mxu0 0.0
      %299 = vmatpush2.xpose.msra.mxu0 0.0
      %300 = vmatprep.subr.mxu0 0.0
      %301 = vmatpush2.xpose.msra.mxu0 0.0
      %302 = vmatprep.subr.mxu0 0.0
      %303 = vmatpush2.xpose.msra.mxu0 0.0
      %304 = vmatprep.subr.mxu0 0.0
      %305 = vmatpush2.xpose.msra.mxu0 0.0
      %306 = vmatprep.subr.mxu0 0.0
      %307 = vmatpush2.xpose.msra.mxu0 0.0
      %308 = vmatprep.subr.mxu0 0.0
      %309 = vmatpush2.xpose.msra.mxu0 0.0
      %310 = vmatprep.subr.mxu0 0.0
      %311 = vmatpush2.xpose.msra.mxu0 0.0
      %312 = vmatprep.subr.mxu0 0.0
      %313 = vmatpush2.xpose.msra.mxu0 0.0
      %314 = vmatprep.subr.mxu0 0.0
      %315 = vmatpush2.xpose.msra.mxu0 0.0
      %316 = vmatprep.subr.mxu0 0.0
      %317 = vmatpush2.xpose.msra.mxu0 0.0
      %318 = vmatprep.subr.mxu0 0.0
      %319 = vmatpush2.xpose.msra.mxu0 0.0
      %320 = vmatprep.subr.mxu0 0.0
      %321 = vmatpush2.xpose.msra.mxu0 0.0
      %322 = vmatprep.subr.mxu0 0.0
      %323 = vmatpush2.xpose.msra.mxu0 0.0
      %324 = vmatprep.mubr.f32.mxu0 0.0
      %325 = vmatmul.mubr.f32.gmra.mxu0 %v243
      %v326 = vpop.f32.mrf.mxu0
      %v327 = vadd.f32 0.0, %v326
      %v328 = vpop.f32.mrf.mxu0
      %329 = vdwg.mxu0
      %330 = vst [vmem:[#allocation11] sm:$0xff] %v327
    $region41: #{tpu_custom_call.1} parent=1 // pred_fallthru
      _
    // Predicated region
    $region42: #{tpu_custom_call.1} parent=1 // pred_check
      _
    $region43: #{tpu_custom_call.1} parent=1 // pred_check_branch
      %332 = sbr.rel (0) target = $region45
    $region44: #{tpu_custom_call.1} parent=1 // pred_region
      %s334 = ssub.s32 128, 128
      %335 = vsyncadd [#allocation5], %s334
      %s337 = sshll.u32 [#allocation11], 4
      %s338 = int_to_ptr.vmem [resolvable:$true] %s337
      %340 = dma.vmem_to_hbm [thread:$0]  %s338, 128, %s4, [#allocation5]
    $region45: #{tpu_custom_call.1} parent=1 // pred_fallthru
      _
    // Predicated region
    $region46: #{tpu_custom_call.1} parent=1 // pred_check
      _
    $region47: #{tpu_custom_call.1} parent=1 // pred_check_branch
      %342 = sbr.rel (0) target = $region49
    $region48: #{tpu_custom_call.1} parent=1 // pred_region
      %343 = dma.done [#allocation5], 128
    $region49: #{tpu_custom_call.1} parent=1 // pred_fallthru
      _
    %344 = vsyncpa [#allocation4], 1
    %345 = vsyncpa [#allocation7], 1
    %346 = vsyncpa [#allocation10], 1
    %347 = vsyncpa [#allocation5], 1

</llo_original>
